<compile_context>
chip_gen: v6e
topology: v6e:2x2x1
jax: 0.10.0
libtpu: 0.0.40
codegen_flags: <defaults>
</compile_context>

<pallas_src>
import jax
import jax.numpy as jnp
import numpy as np
from jax.experimental import pallas as pl
from jax.experimental.pallas import tpu as pltpu

D_MODEL = 32
NUM_VOCAB = 30522          # PyTorch default
TILE_V = 2048              # vocab tile (lane-dense, multiple of 128)


def nlp_output_kernel(x_ref, w1t_ref, b1_ref, w2t_ref, b2_ref, o_ref):
    # x_ref   : (M_pad, D)        flattened (batch*seq, d_model), grid-resident
    # w1t_ref : (D, D)            first Linear weight, already transposed
    # b1_ref  : (1, D)
    # w2t_ref : (D, TILE_V)       current vocab tile of the transposed W2
    # b2_ref  : (1, TILE_V)
    # o_ref   : (M_pad, TILE_V)   lane-dense output tile
    x = x_ref[...]

    # First Linear: tiny (M_pad x D x D) matmul, recomputed per vocab tile
    # (hidden under the W2 tile DMA; avoids cross-grid scratch so the vocab
    # axis can be sharded across cores).
    h = jnp.dot(x, w1t_ref[...], preferred_element_type=jnp.float32) + b1_ref[...]

    # Second Linear, current vocab tile.
    o_ref[...] = (jnp.dot(h, w2t_ref[...], preferred_element_type=jnp.float32)
                  + b2_ref[...])


def nlp_output_pallas(key, val, params):
    """Mirrors NlpOutput.forward(key, val): returns output(val), ignoring key."""
    del key  # unused, as in the PyTorch module
    w1, b1, w2, b2 = params        # PyTorch layouts: w1 (D,D), w2 (V,D)
    B, S, D = val.shape
    V = w2.shape[0]
    M = B * S

    # Pad sublane (rows) to a multiple of 8 and vocab to a multiple of TILE_V.
    M_pad = ((M + 7) // 8) * 8
    num_tiles = pl.cdiv(V, TILE_V)
    V_pad = num_tiles * TILE_V

    x = val.reshape(M, D)
    if M_pad != M:
        x = jnp.pad(x, ((0, M_pad - M), (0, 0)))

    # Host-side weight prep: pre-transpose (no in-kernel .T) and zero-pad vocab.
    w1t = jnp.transpose(w1)                                   # (D, D)
    b1r = b1.reshape(1, D)                                    # (1, D)
    w2t = jnp.pad(jnp.transpose(w2), ((0, 0), (0, V_pad - V)))  # (D, V_pad)
    b2r = jnp.pad(b2, (0, V_pad - V)).reshape(1, V_pad)       # (1, V_pad)

    out = pl.pallas_call(
        nlp_output_kernel,
        out_shape=jax.ShapeDtypeStruct((M_pad, V_pad), jnp.float32),
        grid=(num_tiles,),
        in_specs=[
            # Grid-resident blocks (index map constant -> DMA'd once).
            pl.BlockSpec((M_pad, D), lambda j: (0, 0)),     # activations
            pl.BlockSpec((D, D), lambda j: (0, 0)),         # W1^T
            pl.BlockSpec((1, D), lambda j: (0, 0)),         # b1
            # Streamed vocab tiles.
            pl.BlockSpec((D, TILE_V), lambda j: (0, j)),    # W2^T tile
            pl.BlockSpec((1, TILE_V), lambda j: (0, j)),    # b2 tile
        ],
        out_specs=pl.BlockSpec((M_pad, TILE_V), lambda j: (0, j)),
        compiler_params=pltpu.CompilerParams(
            dimension_semantics=("parallel",)),              # v7x: split tiles across TCs
    )(x, w1t, b1r, w2t, b2r)

    return out[:M, :V].reshape(B, S, V)


# ------------------------- pure-JAX reference -------------------------------
def nlp_output_ref(key, val, params):
    del key
    w1, b1, w2, b2 = params
    h = val @ w1.T + b1
    return h @ w2.T + b2


# ------------------------------ init / main ---------------------------------
if __name__ == "__main__":
    root = jax.random.PRNGKey(0)
    B, S = 2, 8
    ks = jax.random.split(root, 6)

    # `key` tensor is an unused forward argument in the PyTorch module.
    key_arg = jax.random.normal(ks[0], (B, S, D_MODEL), jnp.float32)
    val = jax.random.normal(ks[1], (B, S, D_MODEL), jnp.float32)

    w1 = 0.05 * jax.random.normal(ks[2], (D_MODEL, D_MODEL), jnp.float32)
    b1 = 0.05 * jax.random.normal(ks[3], (D_MODEL,), jnp.float32)
    w2 = 0.05 * jax.random.normal(ks[4], (NUM_VOCAB, D_MODEL), jnp.float32)
    b2 = 0.05 * jax.random.normal(ks[5], (NUM_VOCAB,), jnp.float32)
    params = (w1, b1, w2, b2)

    out = nlp_output_pallas(key_arg, val, params)
    jax.block_until_ready(out)

    ref = nlp_output_ref(key_arg, val, params)
    np.testing.assert_allclose(np.asarray(out), np.asarray(ref),
                               rtol=1e-3, atol=1e-3)
    print("KERNEL_OK")
</pallas_src>

<mosaic_0001>
module attributes {stable_mosaic.version = 11 : i64} {
  func.func @nlp_output_kernel(%arg0: i32, %arg1: memref<16x32xf32, #tpu.memory_space<vmem>>, %arg2: memref<32x32xf32, #tpu.memory_space<vmem>>, %arg3: memref<1x32xf32, #tpu.memory_space<vmem>>, %arg4: memref<32x2048xf32, #tpu.memory_space<vmem>>, %arg5: memref<1x2048xf32, #tpu.memory_space<vmem>>, %arg6: memref<16x2048xf32, #tpu.memory_space<vmem>>) attributes {dimension_semantics = [#tpu.dimension_semantics<parallel>], iteration_bounds = array<i64: 15>, scalar_prefetch = 0 : i64, scratch_operands = 0 : i64, tpu.core_type = #tpu.core_type<tc>, window_params = [{pipeline_mode = #tpu.pipeline_mode<synchronous>, transform_indices = @transform_0, window_bounds = array<i64: 16, 32>}, {pipeline_mode = #tpu.pipeline_mode<synchronous>, transform_indices = @transform_1, window_bounds = array<i64: 32, 32>}, {pipeline_mode = #tpu.pipeline_mode<synchronous>, transform_indices = @transform_2, window_bounds = array<i64: 1, 32>}, {transform_indices = @transform_3, window_bounds = array<i64: 32, 2048>}, {transform_indices = @transform_4, window_bounds = array<i64: 1, 2048>}, {transform_indices = @transform_5, window_bounds = array<i64: 16, 2048>}]} {
    %c0 = arith.constant 0 : index
    %c0_0 = arith.constant 0 : index
    %0 = vector.load %arg1[%c0, %c0_0] : memref<16x32xf32, #tpu.memory_space<vmem>>, vector<16x32xf32>
    %c0_1 = arith.constant 0 : index
    %c0_2 = arith.constant 0 : index
    %1 = vector.load %arg2[%c0_1, %c0_2] : memref<32x32xf32, #tpu.memory_space<vmem>>, vector<32x32xf32>
    %cst = arith.constant dense<0.000000e+00> : vector<16x32xf32>
    %2 = tpu.matmul %0, %1, %cst {dimension_numbers = #tpu.dot_dimension_numbers<[1], [0], [0], [1], [0, 0, 1, 1], [], []>} : vector<16x32xf32>, vector<32x32xf32>, vector<16x32xf32> -> vector<16x32xf32>
    %c0_3 = arith.constant 0 : index
    %c0_4 = arith.constant 0 : index
    %3 = vector.load %arg3[%c0_3, %c0_4] : memref<1x32xf32, #tpu.memory_space<vmem>>, vector<1x32xf32>
    %4 = vector.broadcast %3 : vector<1x32xf32> to vector<16x32xf32>
    %5 = arith.addf %2, %4 : vector<16x32xf32>
    %c0_5 = arith.constant 0 : index
    %c0_6 = arith.constant 0 : index
    %6 = vector.load %arg4[%c0_5, %c0_6] : memref<32x2048xf32, #tpu.memory_space<vmem>>, vector<32x2048xf32>
    %cst_7 = arith.constant dense<0.000000e+00> : vector<16x2048xf32>
    %7 = tpu.matmul %5, %6, %cst_7 {dimension_numbers = #tpu.dot_dimension_numbers<[1], [0], [0], [1], [0, 0, 1, 1], [], []>} : vector<16x32xf32>, vector<32x2048xf32>, vector<16x2048xf32> -> vector<16x2048xf32>
    %c0_8 = arith.constant 0 : index
    %c0_9 = arith.constant 0 : index
    %8 = vector.load %arg5[%c0_8, %c0_9] : memref<1x2048xf32, #tpu.memory_space<vmem>>, vector<1x2048xf32>
    %9 = vector.broadcast %8 : vector<1x2048xf32> to vector<16x2048xf32>
    %10 = arith.addf %7, %9 : vector<16x2048xf32>
    %c0_10 = arith.constant 0 : index
    %c0_11 = arith.constant 0 : index
    %11 = vector.load %arg6[%c0_10, %c0_11] : memref<16x2048xf32, #tpu.memory_space<vmem>>, vector<16x2048xf32>
    tpu.vector_store %arg6[%c0_10, %c0_11], %10 {strides = array<i32>} : memref<16x2048xf32, #tpu.memory_space<vmem>>, vector<16x2048xf32>,
    return
  }
  func.func @transform_0(%arg0: i32) -> (i32, i32) {
    %c0_i32 = arith.constant 0 : i32
    %c0_i32_0 = arith.constant 0 : i32
    %c0_i32_1 = arith.constant 0 : i32
    return %c0_i32, %c0_i32_0 : i32, i32
  }
  func.func @transform_1(%arg0: i32) -> (i32, i32) {
    %c0_i32 = arith.constant 0 : i32
    %c0_i32_0 = arith.constant 0 : i32
    %c0_i32_1 = arith.constant 0 : i32
    return %c0_i32, %c0_i32_0 : i32, i32
  }
  func.func @transform_2(%arg0: i32) -> (i32, i32) {
    %c0_i32 = arith.constant 0 : i32
    %c0_i32_0 = arith.constant 0 : i32
    %c0_i32_1 = arith.constant 0 : i32
    return %c0_i32, %c0_i32_0 : i32, i32
  }
  func.func @transform_3(%arg0: i32) -> (i32, i32) {
    %c0_i32 = arith.constant 0 : i32
    %c0_i32_0 = arith.constant 0 : i32
    return %c0_i32, %arg0 : i32, i32
  }
  func.func @transform_4(%arg0: i32) -> (i32, i32) {
    %c0_i32 = arith.constant 0 : i32
    %c0_i32_0 = arith.constant 0 : i32
    return %c0_i32, %arg0 : i32, i32
  }
  func.func @transform_5(%arg0: i32) -> (i32, i32) {
    %c0_i32 = arith.constant 0 : i32
    %c0_i32_0 = arith.constant 0 : i32
    return %c0_i32, %arg0 : i32, i32
  }
}

</mosaic_0001>

<llo_original>
// kernel: tpu_custom_call.1
$region0: #{tpu_custom_call.1}
  #allocation0 [shape = 'u32[]', space=smem, size = 0x4, offset = 0x4, fixed_abs, tag = 'smem constant byte address 0x4 - core index']
  #allocation1 [shape = 'u32[144,128]{1,0:T(1,128)}', space=vmem, size = 0x12000, scoped, tag = 'internal scratch']
  %s0 = inlined_call_operand.hbm [shape: f32[16,32], index: 0, kind: input, shape index: {}]
  %s1 = inlined_call_operand.hbm [shape: f32[32,32], index: 1, kind: input, shape index: {}]
  %s2 = inlined_call_operand.hbm [shape: f32[1,32], index: 2, kind: input, shape index: {}]
  %s3 = inlined_call_operand.hbm [shape: f32[32,30720], index: 3, kind: input, shape index: {}]
  %s4 = inlined_call_operand.hbm [shape: f32[1,30720], index: 4, kind: input, shape index: {}]
  %s5 = inlined_call_operand.hbm [shape: f32[16,30720], index: 5, kind: output, shape index: {}]
  %s6 = sld [smem:[#allocation0]]
  $region73: #{tpu_custom_call.1} parent=0
    _
  %s8 = ssub.s32 1, %s6
  %s9 = scalar_select 0, %s8, %s6
  $region1: #{tpu_custom_call.1} parent=0
    #allocation2 [shape = 'u8[8192]{0}', space=vmem, size = 0x2000, scoped, tag = 'input window, operand 0, single buffered']
    #allocation3 [shape = 's32[2]{0}', space=sflag, size = 0x8, scoped, tag = 'scoped memory for tpu_custom_call.1']
    #allocation4 [shape = 's32[2]{0}', space=sflag, size = 0x8, scoped, tag = 'scoped memory for tpu_custom_call.1']
    #allocation5 [shape = 'u8[16384]{0}', space=vmem, size = 0x4000, scoped, tag = 'input window, operand 1, single buffered']
    #allocation6 [shape = 's32[1]{0}', space=sflag, size = 0x4, scoped, tag = 'scoped memory for tpu_custom_call.1']
    #allocation7 [shape = 'u8[512]{0}', space=vmem, size = 0x400, scoped, tag = 'input window, operand 2, single buffered']
    #allocation8 [shape = 'u8[524288]{0}', space=vmem, size = 0x80000, scoped, tag = 'input window, operand 3']
    #allocation9 [shape = 's32[2]{0}', space=sflag, size = 0x8, scoped, tag = 'scoped memory for tpu_custom_call.1']
    #allocation10 [shape = 'u8[16384]{0}', space=vmem, size = 0x4000, scoped, tag = 'input window, operand 4']
    #allocation11 [shape = 'u8[262144]{0}', space=vmem, size = 0x40000, scoped, tag = 'output window, operand 0']
    %10 = vsyncpa [#allocation3], 0
    %11 = vsyncpa [#allocation6], 0
    %12 = vsyncpa [#allocation9], 0
    %s13 = scalar_lea.sflag [#allocation9], 1
    %14 = vsyncpa %s13, 0
    %15 = vsyncpa [#allocation4], 0
    %s16 = scalar_lea.sflag [#allocation4], 1
    %17 = vsyncpa %s16, 0
    loop: start=0, step=1, limit=17
    $region2: #{tpu_custom_call.1} parent=1 // loop_pre_header
      _
    $region3: #{tpu_custom_call.1} parent=1 // loop_header
      %s19 = sphi 0, %s23
      %p20 = scmp.ge.s32.totalorder %s19, 17
      %s27 = sphi 0, %s27
      %s29 = sphi 0, %s27
      %s30 = sphi 0, %s29
      %s44 = sphi 0, %s30
      %s48 = sphi 0, %s48
      %s50 = sphi 0, %s48
      %s51 = sphi 0, %s50
      %s65 = sphi 0, %s51
      %s69 = sphi 0, %s69
      %s71 = sphi 0, %s69
      %s72 = sphi 0, %s71
      %s86 = sphi 0, %s72
      %s92 = sphi 0, %s94
      %s95 = sphi 0, %s92
      %s96 = sphi 0, %s95
      %s112 = sphi 0, %s96
      %s118 = sphi 0, %s120
      %s121 = sphi 0, %s118
      %s122 = sphi 0, %s121
      %s138 = sphi 0, %s122
      %s144 = sphi 0, %s146
      %s147 = sphi 0, %s144
      %s148 = sphi 0, %s147
      %s164 = sphi 0, %s148
    $region4: #{tpu_custom_call.1} parent=1 // loop_header_branch
      %22 = sbr.rel (%p20) target = $region8
    $region5: #{tpu_custom_call.1} parent=1 // loop_body
      %s24 = ssub.s32 %s19, 1
      %s25 = ssub.s32 %s19, 2
      %s26 = sadd.s32 %s19, 1
      %s28 = sadd.s32 %s27, 1
      %p31 = scmp.eq.s32.totalorder %s19, 14
      %p32 = scmp.ne.s32.totalorder %s27, %s29
      %p33 = scmp.eq.s32.totalorder %s19, 0
      %p34 = por %p32, %p33
      %p35 = scmp.ne.s32.totalorder %s27, %s29
      %p36 = scmp.eq.s32.totalorder %s24, 14
      %p37 = por %p35, %p36
      %p38 = scmp.ne.s32.totalorder %s29, %s30
      %p39 = scmp.eq.s32.totalorder %s24, 0
      %p40 = por %p38, %p39
      %p41 = scmp.ne.s32.totalorder %s29, %s30
      %p42 = scmp.eq.s32.totalorder %s25, 14
      %p43 = por %p41, %p42
      %p45 = scmp.ne.s32.totalorder %s30, %s44
      %p46 = scmp.eq.s32.totalorder %s25, 0
      %p47 = por %p45, %p46
      %s49 = sadd.s32 %s48, 1
      %p52 = scmp.eq.s32.totalorder %s19, 14
      %p53 = scmp.ne.s32.totalorder %s48, %s50
      %p54 = scmp.eq.s32.totalorder %s19, 0
      %p55 = por %p53, %p54
      %p56 = scmp.ne.s32.totalorder %s48, %s50
      %p57 = scmp.eq.s32.totalorder %s24, 14
      %p58 = por %p56, %p57
      %p59 = scmp.ne.s32.totalorder %s50, %s51
      %p60 = scmp.eq.s32.totalorder %s24, 0
      %p61 = por %p59, %p60
      %p62 = scmp.ne.s32.totalorder %s50, %s51
      %p63 = scmp.eq.s32.totalorder %s25, 14
      %p64 = por %p62, %p63
      %p66 = scmp.ne.s32.totalorder %s51, %s65
      %p67 = scmp.eq.s32.totalorder %s25, 0
      %p68 = por %p66, %p67
      %s70 = sadd.s32 %s69, 1
      %p73 = scmp.eq.s32.totalorder %s19, 14
      %p74 = scmp.ne.s32.totalorder %s69, %s71
      %p75 = scmp.eq.s32.totalorder %s19, 0
      %p76 = por %p74, %p75
      %p77 = scmp.ne.s32.totalorder %s69, %s71
      %p78 = scmp.eq.s32.totalorder %s24, 14
      %p79 = por %p77, %p78
      %p80 = scmp.ne.s32.totalorder %s71, %s72
      %p81 = scmp.eq.s32.totalorder %s24, 0
      %p82 = por %p80, %p81
      %p83 = scmp.ne.s32.totalorder %s71, %s72
      %p84 = scmp.eq.s32.totalorder %s25, 14
      %p85 = por %p83, %p84
      %p87 = scmp.ne.s32.totalorder %s72, %s86
      %p88 = scmp.eq.s32.totalorder %s25, 0
      %p89 = por %p87, %p88
      %s90 = ssub.s32 %s19, %s26
      %p91 = scmp.eq.s32.totalorder %s90, 0
      %s93 = sadd.s32 %s92, 1
      %s94 = scalar_select %p91, %s92, %s93
      %p97 = pneg %p91
      %p98 = scmp.eq.s32.totalorder %s19, 14
      %p99 = por %p97, %p98
      %p100 = scmp.ne.s32.totalorder %s92, %s95
      %p101 = scmp.eq.s32.totalorder %s19, 0
      %p102 = por %p100, %p101
      %p103 = scmp.ne.s32.totalorder %s92, %s95
      %p104 = scmp.eq.s32.totalorder %s24, 14
      %p105 = por %p103, %p104
      %p106 = scmp.ne.s32.totalorder %s95, %s96
      %p107 = scmp.eq.s32.totalorder %s24, 0
      %p108 = por %p106, %p107
      %p109 = scmp.ne.s32.totalorder %s95, %s96
      %p110 = scmp.eq.s32.totalorder %s25, 14
      %p111 = por %p109, %p110
      %p113 = scmp.ne.s32.totalorder %s96, %s112
      %p114 = scmp.eq.s32.totalorder %s25, 0
      %p115 = por %p113, %p114
      %s116 = ssub.s32 %s19, %s26
      %p117 = scmp.eq.s32.totalorder %s116, 0
      %s119 = sadd.s32 %s118, 1
      %s120 = scalar_select %p117, %s118, %s119
      %p123 = pneg %p117
      %p124 = scmp.eq.s32.totalorder %s19, 14
      %p125 = por %p123, %p124
      %p126 = scmp.ne.s32.totalorder %s118, %s121
      %p127 = scmp.eq.s32.totalorder %s19, 0
      %p128 = por %p126, %p127
      %p129 = scmp.ne.s32.totalorder %s118, %s121
      %p130 = scmp.eq.s32.totalorder %s24, 14
      %p131 = por %p129, %p130
      %p132 = scmp.ne.s32.totalorder %s121, %s122
      %p133 = scmp.eq.s32.totalorder %s24, 0
      %p134 = por %p132, %p133
      %p135 = scmp.ne.s32.totalorder %s121, %s122
      %p136 = scmp.eq.s32.totalorder %s25, 14
      %p137 = por %p135, %p136
      %p139 = scmp.ne.s32.totalorder %s122, %s138
      %p140 = scmp.eq.s32.totalorder %s25, 0
      %p141 = por %p139, %p140
      %s142 = ssub.s32 %s19, %s26
      %p143 = scmp.eq.s32.totalorder %s142, 0
      %s145 = sadd.s32 %s144, 1
      %s146 = scalar_select %p143, %s144, %s145
      %p149 = pneg %p143
      %p150 = scmp.eq.s32.totalorder %s19, 14
      %p151 = por %p149, %p150
      %p152 = scmp.ne.s32.totalorder %s144, %s147
      %p153 = scmp.eq.s32.totalorder %s19, 0
      %p154 = por %p152, %p153
      %p155 = scmp.ne.s32.totalorder %s144, %s147
      %p156 = scmp.eq.s32.totalorder %s24, 14
      %p157 = por %p155, %p156
      %p158 = scmp.ne.s32.totalorder %s147, %s148
      %p159 = scmp.eq.s32.totalorder %s24, 0
      %p160 = por %p158, %p159
      %p161 = scmp.ne.s32.totalorder %s147, %s148
      %p162 = scmp.eq.s32.totalorder %s25, 14
      %p163 = por %p161, %p162
      %p165 = scmp.ne.s32.totalorder %s148, %s164
      %p166 = scmp.eq.s32.totalorder %s25, 0
      %p167 = por %p165, %p166
      %p168 = scmp.le.s32.totalorder 1, %s19
      %p169 = scmp.lt.s32.totalorder %s19, 16
      %p170 = pnand %p168, %p169
      %p171 = pneg %p170
      // Predicated region
      $region9: #{tpu_custom_call.1} parent=5 // pred_check
        _
      $region10: #{tpu_custom_call.1} parent=5 // pred_check_branch
        %173 = sbr.rel (%p170) target = $region12
      $region11: #{tpu_custom_call.1} parent=5 // pred_region
        %s174 = ssub.s32 %s19, 1
        // Predicated region
        $region13: #{tpu_custom_call.1} parent=11 // pred_check
          %p175 = pneg %p40
        $region14: #{tpu_custom_call.1} parent=11 // pred_check_branch
          %177 = sbr.rel (%p175) target = $region16
        $region15: #{tpu_custom_call.1} parent=11 // pred_region
          %s179 = ssub.s32 256, 256
          %180 = vsyncadd [#allocation3], %s179
          %s181 = sshll.u32 [#allocation2], 4
          %s182 = int_to_ptr.vmem [resolvable:$true] %s181
          %187 = dma.hbm_to_vmem [thread:$0]  %s0, 256, %s182, [#allocation3], 128, 128, 8
        $region16: #{tpu_custom_call.1} parent=11 // pred_fallthru
          _
        // Predicated region
        $region17: #{tpu_custom_call.1} parent=11 // pred_check
          %p188 = pneg %p61
        $region18: #{tpu_custom_call.1} parent=11 // pred_check_branch
          %190 = sbr.rel (%p188) target = $region20
        $region19: #{tpu_custom_call.1} parent=11 // pred_region
          %s192 = ssub.s32 512, 512
          %193 = vsyncadd [#allocation6], %s192
          %s194 = sshll.u32 [#allocation5], 4
          %s195 = int_to_ptr.vmem [resolvable:$true] %s194
          %200 = dma.hbm_to_vmem [thread:$0]  %s1, 512, %s195, [#allocation6], 128, 128, 8
        $region20: #{tpu_custom_call.1} parent=11 // pred_fallthru
          _
        // Predicated region
        $region21: #{tpu_custom_call.1} parent=11 // pred_check
          %p201 = pneg %p82
        $region22: #{tpu_custom_call.1} parent=11 // pred_check_branch
          %203 = sbr.rel (%p201) target = $region24
        $region23: #{tpu_custom_call.1} parent=11 // pred_region
          %s205 = ssub.s32 16, 16
          %206 = vsyncadd [#allocation6], %s205
          %s208 = sshll.u32 [#allocation7], 4
          %s209 = int_to_ptr.vmem [resolvable:$true] %s208
          %211 = dma.hbm_to_vmem [thread:$0]  %s2, 16, %s209, [#allocation6]
        $region24: #{tpu_custom_call.1} parent=11 // pred_fallthru
          _
      $region12: #{tpu_custom_call.1} parent=5 // pred_fallthru
        _
      %p212 = scmp.lt.s32.totalorder %s19, 15
      // Predicated region
      $region25: #{tpu_custom_call.1} parent=5 // pred_check
        %p213 = pneg %p212
      $region26: #{tpu_custom_call.1} parent=5 // pred_check_branch
        %215 = sbr.rel (%p213) target = $region28
      $region27: #{tpu_custom_call.1} parent=5 // pred_region
        // Predicated region
        $region29: #{tpu_custom_call.1} parent=27 // pred_check
          %p216 = pneg %p102
        $region30: #{tpu_custom_call.1} parent=27 // pred_check_branch
          %218 = sbr.rel (%p216) target = $region32
        $region31: #{tpu_custom_call.1} parent=27 // pred_region
          %s219 = sand.u32 %s19, 1
          %s220 = scalar_lea.sflag [#allocation9], %s219
          %s221 = sand.u32 %s92, 1
          %s222 = smul.addr %s221, 512
          %s223 = scalar_lea.vmem [#allocation8], %s222
          %s224 = smul.u32 16, %s19
          %s226 = ssub.s32 8192, 8192
          %227 = vsyncadd %s220, %s226
          %s228 = smul.addr %s224, 128
          %s229 = scalar_lea.hbm %s3, %s228
          %s230 = sshll.u32 %s223, 4
          %s231 = int_to_ptr.vmem [resolvable:$true] %s230
          %236 = dma.hbm_to_vmem [thread:$0]  %s229, 8192, %s231, %s220, 30720, 2048, 128
        $region32: #{tpu_custom_call.1} parent=27 // pred_fallthru
          _
        // Predicated region
        $region33: #{tpu_custom_call.1} parent=27 // pred_check
          %p237 = pneg %p128
        $region34: #{tpu_custom_call.1} parent=27 // pred_check_branch
          %239 = sbr.rel (%p237) target = $region36
        $region35: #{tpu_custom_call.1} parent=27 // pred_region
          %s240 = sand.u32 %s19, 1
          %s241 = scalar_lea.sflag [#allocation9], %s240
          %s242 = sand.u32 %s118, 1
          %s243 = smul.addr %s242, 16
          %s244 = scalar_lea.vmem [#allocation10], %s243
          %s245 = smul.u32 16, %s19
          %s247 = ssub.s32 256, 256
          %248 = vsyncadd %s241, %s247
          %s249 = smul.addr %s245, 16
          %s250 = scalar_lea.hbm %s4, %s249
          %s252 = sshll.u32 %s244, 4
          %s253 = int_to_ptr.vmem [resolvable:$true] %s252
          %255 = dma.hbm_to_vmem [thread:$0]  %s250, 256, %s253, %s241
        $region36: #{tpu_custom_call.1} parent=27 // pred_fallthru
          _
      $region28: #{tpu_custom_call.1} parent=5 // pred_fallthru
        _
      %p256 = scmp.le.s32.totalorder 1, %s19
      %p257 = scmp.lt.s32.totalorder %s19, 16
      %p258 = pnand %p256, %p257
      %p259 = pneg %p258
      // Predicated region
      $region37: #{tpu_custom_call.1} parent=5 // pred_check
        _
      $region38: #{tpu_custom_call.1} parent=5 // pred_check_branch
        %261 = sbr.rel (%p258) target = $region40
      $region39: #{tpu_custom_call.1} parent=5 // pred_region
        %s262 = ssub.s32 %s19, 1
        // Predicated region
        $region41: #{tpu_custom_call.1} parent=39 // pred_check
          %p263 = pneg %p40
        $region42: #{tpu_custom_call.1} parent=39 // pred_check_branch
          %265 = sbr.rel (%p263) target = $region44
        $region43: #{tpu_custom_call.1} parent=39 // pred_region
          %266 = dma.done [#allocation3], 256
        $region44: #{tpu_custom_call.1} parent=39 // pred_fallthru
          _
        // Predicated region
        $region45: #{tpu_custom_call.1} parent=39 // pred_check
          %p267 = pneg %p61
        $region46: #{tpu_custom_call.1} parent=39 // pred_check_branch
          %269 = sbr.rel (%p267) target = $region48
        $region47: #{tpu_custom_call.1} parent=39 // pred_region
          %270 = dma.done [#allocation6], 512
        $region48: #{tpu_custom_call.1} parent=39 // pred_fallthru
          _
        // Predicated region
        $region49: #{tpu_custom_call.1} parent=39 // pred_check
          %p271 = pneg %p82
        $region50: #{tpu_custom_call.1} parent=39 // pred_check_branch
          %273 = sbr.rel (%p271) target = $region52
        $region51: #{tpu_custom_call.1} parent=39 // pred_region
          %274 = dma.done [#allocation6], 16
        $region52: #{tpu_custom_call.1} parent=39 // pred_fallthru
          _
        %s275 = sand.u32 %s24, 1
        %s276 = scalar_lea.sflag [#allocation9], %s275
        %s277 = sand.u32 %s95, 1
        %s278 = smul.addr %s277, 512
        %s279 = scalar_lea.vmem [#allocation8], %s278
        // Predicated region
        $region53: #{tpu_custom_call.1} parent=39 // pred_check
          %p280 = pneg %p108
        $region54: #{tpu_custom_call.1} parent=39 // pred_check_branch
          %282 = sbr.rel (%p280) target = $region56
        $region55: #{tpu_custom_call.1} parent=39 // pred_region
          %283 = dma.done %s276, 8192
        $region56: #{tpu_custom_call.1} parent=39 // pred_fallthru
          _
        %s284 = sand.u32 %s24, 1
        %s285 = scalar_lea.sflag [#allocation9], %s284
        %s286 = sand.u32 %s121, 1
        %s287 = smul.addr %s286, 16
        %s288 = scalar_lea.vmem [#allocation10], %s287
        // Predicated region
        $region57: #{tpu_custom_call.1} parent=39 // pred_check
          %p289 = pneg %p134
        $region58: #{tpu_custom_call.1} parent=39 // pred_check_branch
          %291 = sbr.rel (%p289) target = $region60
        $region59: #{tpu_custom_call.1} parent=39 // pred_region
          %292 = dma.done %s285, 256
        $region60: #{tpu_custom_call.1} parent=39 // pred_fallthru
          _
        %p293 = pneg %p40
        %p294 = pneg %p37
        %p295 = pneg %p61
        %p296 = pneg %p58
        %p297 = pneg %p82
        %p298 = pneg %p79
        %s299 = sand.u32 %s24, 1
        %s300 = scalar_lea.sflag [#allocation9], %s299
        %s301 = sand.u32 %s95, 1
        %s302 = smul.addr %s301, 512
        %s303 = scalar_lea.vmem [#allocation8], %s302
        %p304 = pneg %p108
        %p305 = pneg %p105
        %s306 = sand.u32 %s24, 1
        %s307 = scalar_lea.sflag [#allocation9], %s306
        %s308 = sand.u32 %s121, 1
        %s309 = smul.addr %s308, 16
        %s310 = scalar_lea.vmem [#allocation10], %s309
        %p311 = pneg %p134
        %p312 = pneg %p131
        %p313 = pneg %p160
        %p314 = pneg %p157
        %s315 = sand.u32 %s147, 1
        %s316 = scalar_lea.sflag [#allocation4], %s315
        %s317 = sand.u32 %s147, 1
        %s318 = smul.addr %s317, 256
        %s319 = scalar_lea.vmem [#allocation11], %s318
        %s320 = smul.u32 16, %s24
        %s321 = smul.u32 16, %s24
        %s322 = smul.u32 16, %s24
        %v323 = vld [vmem:[#allocation2] sm:$0xff]
        %v324 = vld [vmem:[#allocation2 + $0x8] sm:$0xff]
        %v325 = vld [vmem:[#allocation5] sm:$0xff]
        %v326 = vld [vmem:[#allocation5 + $0x8] sm:$0xff]
        %v327 = vld [vmem:[#allocation5 + $0x10] sm:$0xff]
        %v328 = vld [vmem:[#allocation5 + $0x18] sm:$0xff]
        %v329 = vld [vmem:[#allocation7] sm:$0x1]
        %v331 = vlaneseq
        %v332 = vshrl.u32 %v331, 7
        %v333 = vsub.s32 0, %v332
        %v334 = vrot.slane %v329, %v333
        %vm336 = vcmask 261120
        %v338 = vsel %vm336, %v323, 0
        %v341 = vsel %vm336, %v324, 0
        %343 = vmatprep.subr.mxu0 0.0
        %344 = vmatpush1.msra.mxu0 0.0
        %345 = vmatprep.subr.mxu0 0.0
        %346 = vmatpush1.msra.mxu0 0.0
        %347 = vmatprep.subr.mxu0 0.0
        %348 = vmatpush1.msra.mxu0 0.0
        %349 = vmatprep.subr.mxu0 0.0
        %350 = vmatpush1.msra.mxu0 0.0
        %351 = vmatprep.subr.mxu0 0.0
        %352 = vmatpush1.msra.mxu0 0.0
        %353 = vmatprep.subr.mxu0 0.0
        %354 = vmatpush1.msra.mxu0 0.0
        %355 = vmatprep.subr.mxu0 0.0
        %356 = vmatpush1.msra.mxu0 0.0
        %357 = vmatprep.subr.mxu0 0.0
        %358 = vmatpush1.msra.mxu0 0.0
        %359 = vmatprep.subr.mxu0 0.0
        %360 = vmatpush1.msra.mxu0 0.0
        %361 = vmatprep.subr.mxu0 0.0
        %362 = vmatpush1.msra.mxu0 0.0
        %363 = vmatprep.subr.mxu0 0.0
        %364 = vmatpush1.msra.mxu0 0.0
        %365 = vmatprep.subr.mxu0 0.0
        %366 = vmatpush1.msra.mxu0 0.0
        %367 = vmatprep.subr.mxu0 0.0
        %368 = vmatpush1.msra.mxu0 %v328
        %369 = vmatprep.subr.mxu0 0.0
        %370 = vmatpush1.msra.mxu0 %v327
        %371 = vmatprep.subr.mxu0 0.0
        %372 = vmatpush1.msra.mxu0 %v326
        %373 = vmatprep.subr.mxu0 0.0
        %374 = vmatpush1.msra.mxu0 %v325
        %375 = vmatprep.subr.mxu0 0.0
        %376 = vmatpush2.msra.mxu0 0.0
        %377 = vmatprep.subr.mxu0 0.0
        %378 = vmatpush2.msra.mxu0 0.0
        %379 = vmatprep.subr.mxu0 0.0
        %380 = vmatpush2.msra.mxu0 0.0
        %381 = vmatprep.subr.mxu0 0.0
        %382 = vmatpush2.msra.mxu0 0.0
        %383 = vmatprep.subr.mxu0 0.0
        %384 = vmatpush2.msra.mxu0 0.0
        %385 = vmatprep.subr.mxu0 0.0
        %386 = vmatpush2.msra.mxu0 0.0
        %387 = vmatprep.subr.mxu0 0.0
        %388 = vmatpush2.msra.mxu0 0.0
        %389 = vmatprep.subr.mxu0 0.0
        %390 = vmatpush2.msra.mxu0 0.0
        %391 = vmatprep.subr.mxu0 0.0
        %392 = vmatpush2.msra.mxu0 0.0
        %393 = vmatprep.subr.mxu0 0.0
        %394 = vmatpush2.msra.mxu0 0.0
        %395 = vmatprep.subr.mxu0 0.0
        %396 = vmatpush2.msra.mxu0 0.0
        %397 = vmatprep.subr.mxu0 0.0
        %398 = vmatpush2.msra.mxu0 0.0
        %399 = vmatprep.subr.mxu0 0.0
        %400 = vmatpush2.msra.mxu0 0.0
        %401 = vmatprep.subr.mxu0 0.0
        %402 = vmatpush2.msra.mxu0 0.0
        %403 = vmatprep.subr.mxu0 0.0
        %404 = vmatpush2.msra.mxu0 0.0
        %405 = vmatprep.subr.mxu0 0.0
        %406 = vmatpush2.msra.mxu0 0.0
        %407 = vmatprep.mubr.f32.mxu0 0.0
        %408 = vmatmul.mubr.f32.gmra.mxu0 %v338
        %v409 = vpop.f32.mrf.mxu0
        %v410 = vadd.f32 %v334, %v409
        %v411 = vpop.f32.mrf.mxu0
        %412 = vmatprep.mubr.f32.mxu0 0.0
        %413 = vmatmul.mubr.f32.gmra.mxu0 %v341
        %v414 = vpop.f32.mrf.mxu0
        %v415 = vadd.f32 %v334, %v414
        %v416 = vpop.f32.mrf.mxu0
        %417 = vdwg.mxu0
        %v418 = vld [vmem:[%s279] sm:$0xff]
        %v419 = vld [vmem:[%s279 + $0x8] sm:$0xff]
        %v420 = vld [vmem:[%s279 + $0x10] sm:$0xff]
        %v421 = vld [vmem:[%s279 + $0x18] sm:$0xff]
        %v422 = vld [vmem:[%s279 + $0x20] sm:$0xff]
        %v423 = vld [vmem:[%s279 + $0x28] sm:$0xff]
        %v424 = vld [vmem:[%s279 + $0x30] sm:$0xff]
        %v425 = vld [vmem:[%s279 + $0x38] sm:$0xff]
        %v426 = vld [vmem:[%s279 + $0x40] sm:$0xff]
        %v427 = vld [vmem:[%s279 + $0x48] sm:$0xff]
        %v428 = vld [vmem:[%s279 + $0x50] sm:$0xff]
        %v429 = vld [vmem:[%s279 + $0x58] sm:$0xff]
        %v430 = vld [vmem:[%s279 + $0x60] sm:$0xff]
        %v431 = vld [vmem:[%s279 + $0x68] sm:$0xff]
        %v432 = vld [vmem:[%s279 + $0x70] sm:$0xff]
        %v433 = vld [vmem:[%s279 + $0x78] sm:$0xff]
        %v434 = vld [vmem:[%s279 + $0x80] sm:$0xff]
        %v435 = vld [vmem:[%s279 + $0x88] sm:$0xff]
        %v436 = vld [vmem:[%s279 + $0x90] sm:$0xff]
        %v437 = vld [vmem:[%s279 + $0x98] sm:$0xff]
        %v438 = vld [vmem:[%s279 + $0xa0] sm:$0xff]
        %v439 = vld [vmem:[%s279 + $0xa8] sm:$0xff]
        %v440 = vld [vmem:[%s279 + $0xb0] sm:$0xff]
        %v441 = vld [vmem:[%s279 + $0xb8] sm:$0xff]
        %v442 = vld [vmem:[%s279 + $0xc0] sm:$0xff]
        %v443 = vld [vmem:[%s279 + $0xc8] sm:$0xff]
        %v444 = vld [vmem:[%s279 + $0xd0] sm:$0xff]
        %v445 = vld [vmem:[%s279 + $0xd8] sm:$0xff]
        %v446 = vld [vmem:[%s279 + $0xe0] sm:$0xff]
        %v447 = vld [vmem:[%s279 + $0xe8] sm:$0xff]
        %v448 = vld [vmem:[%s279 + $0xf0] sm:$0xff]
        %v449 = vld [vmem:[%s279 + $0xf8] sm:$0xff]
        %v450 = vld [vmem:[%s279 + $0x100] sm:$0xff]
        %v451 = vld [vmem:[%s279 + $0x108] sm:$0xff]
        %v452 = vld [vmem:[%s279 + $0x110] sm:$0xff]
        %v453 = vld [vmem:[%s279 + $0x118] sm:$0xff]
        %v454 = vld [vmem:[%s279 + $0x120] sm:$0xff]
        %v455 = vld [vmem:[%s279 + $0x128] sm:$0xff]
        %v456 = vld [vmem:[%s279 + $0x130] sm:$0xff]
        %v457 = vld [vmem:[%s279 + $0x138] sm:$0xff]
        %v458 = vld [vmem:[%s279 + $0x140] sm:$0xff]
        %v459 = vld [vmem:[%s279 + $0x148] sm:$0xff]
        %v460 = vld [vmem:[%s279 + $0x150] sm:$0xff]
        %v461 = vld [vmem:[%s279 + $0x158] sm:$0xff]
        %v462 = vld [vmem:[%s279 + $0x160] sm:$0xff]
        %v463 = vld [vmem:[%s279 + $0x168] sm:$0xff]
        %v464 = vld [vmem:[%s279 + $0x170] sm:$0xff]
        %v465 = vld [vmem:[%s279 + $0x178] sm:$0xff]
        %v466 = vld [vmem:[%s279 + $0x180] sm:$0xff]
        %v467 = vld [vmem:[%s279 + $0x188] sm:$0xff]
        %v468 = vld [vmem:[%s279 + $0x190] sm:$0xff]
        %v469 = vld [vmem:[%s279 + $0x198] sm:$0xff]
        %v470 = vld [vmem:[%s279 + $0x1a0] sm:$0xff]
        %v471 = vld [vmem:[%s279 + $0x1a8] sm:$0xff]
        %v472 = vld [vmem:[%s279 + $0x1b0] sm:$0xff]
        %v473 = vld [vmem:[%s279 + $0x1b8] sm:$0xff]
        %v474 = vld [vmem:[%s279 + $0x1c0] sm:$0xff]
        %v475 = vld [vmem:[%s279 + $0x1c8] sm:$0xff]
        %v476 = vld [vmem:[%s279 + $0x1d0] sm:$0xff]
        %v477 = vld [vmem:[%s279 + $0x1d8] sm:$0xff]
        %v478 = vld [vmem:[%s279 + $0x1e0] sm:$0xff]
        %v479 = vld [vmem:[%s279 + $0x1e8] sm:$0xff]
        %v480 = vld [vmem:[%s279 + $0x1f0] sm:$0xff]
        %v481 = vld [vmem:[%s279 + $0x1f8] sm:$0xff]
        %v482 = vld [vmem:[%s288] sm:$0xff]
        %v483 = vld [vmem:[%s288 + $0x8] sm:$0xff]
        %v486 = vlaneseq
        %v487 = vshrl.u32 %v486, 7
        %v488 = vsub.s32 0, %v487
        %v489 = vrot.slane %v482, %v488
        %v490 = vlaneseq
        %v491 = vshrl.u32 %v490, 7
        %v492 = vsub.s32 1, %v491
        %v493 = vrot.slane %v482, %v492
        %v494 = vlaneseq
        %v495 = vshrl.u32 %v494, 7
        %v496 = vsub.s32 2, %v495
        %v497 = vrot.slane %v482, %v496
        %v498 = vlaneseq
        %v499 = vshrl.u32 %v498, 7
        %v500 = vsub.s32 3, %v499
        %v501 = vrot.slane %v482, %v500
        %v502 = vlaneseq
        %v503 = vshrl.u32 %v502, 7
        %v504 = vsub.s32 4, %v503
        %v505 = vrot.slane %v482, %v504
        %v506 = vlaneseq
        %v507 = vshrl.u32 %v506, 7
        %v508 = vsub.s32 5, %v507
        %v509 = vrot.slane %v482, %v508
        %v510 = vlaneseq
        %v511 = vshrl.u32 %v510, 7
        %v512 = vsub.s32 6, %v511
        %v513 = vrot.slane %v482, %v512
        %v514 = vlaneseq
        %v515 = vshrl.u32 %v514, 7
        %v516 = vsub.s32 7, %v515
        %v517 = vrot.slane %v482, %v516
        %v518 = vlaneseq
        %v519 = vshrl.u32 %v518, 7
        %v520 = vsub.s32 0, %v519
        %v521 = vrot.slane %v483, %v520
        %v522 = vlaneseq
        %v523 = vshrl.u32 %v522, 7
        %v524 = vsub.s32 1, %v523
        %v525 = vrot.slane %v483, %v524
        %v526 = vlaneseq
        %v527 = vshrl.u32 %v526, 7
        %v528 = vsub.s32 2, %v527
        %v529 = vrot.slane %v483, %v528
        %v530 = vlaneseq
        %v531 = vshrl.u32 %v530, 7
        %v532 = vsub.s32 3, %v531
        %v533 = vrot.slane %v483, %v532
        %v534 = vlaneseq
        %v535 = vshrl.u32 %v534, 7
        %v536 = vsub.s32 4, %v535
        %v537 = vrot.slane %v483, %v536
        %v538 = vlaneseq
        %v539 = vshrl.u32 %v538, 7
        %v540 = vsub.s32 5, %v539
        %v541 = vrot.slane %v483, %v540
        %v542 = vlaneseq
        %v543 = vshrl.u32 %v542, 7
        %v544 = vsub.s32 6, %v543
        %v545 = vrot.slane %v483, %v544
        %v546 = vlaneseq
        %v547 = vshrl.u32 %v546, 7
        %v548 = vsub.s32 7, %v547
        %v549 = vrot.slane %v483, %v548
        %v567 = vsel %vm336, %v410, 0
        %v570 = vsel %vm336, %v415, 0
        %572 = vmatprep.subr.mxu0 0.0
        %573 = vmatpush1.msra.mxu0 0.0
        %574 = vmatprep.subr.mxu0 0.0
        %575 = vmatpush1.msra.mxu0 0.0
        %576 = vmatprep.subr.mxu0 0.0
        %577 = vmatpush1.msra.mxu0 0.0
        %578 = vmatprep.subr.mxu0 0.0
        %579 = vmatpush1.msra.mxu0 0.0
        %580 = vmatprep.subr.mxu0 0.0
        %581 = vmatpush1.msra.mxu0 0.0
        %582 = vmatprep.subr.mxu0 0.0
        %583 = vmatpush1.msra.mxu0 0.0
        %584 = vmatprep.subr.mxu0 0.0
        %585 = vmatpush1.msra.mxu0 0.0
        %586 = vmatprep.subr.mxu0 0.0
        %587 = vmatpush1.msra.mxu0 0.0
        %588 = vmatprep.subr.mxu0 0.0
        %589 = vmatpush1.msra.mxu0 0.0
        %590 = vmatprep.subr.mxu0 0.0
        %591 = vmatpush1.msra.mxu0 0.0
        %592 = vmatprep.subr.mxu0 0.0
        %593 = vmatpush1.msra.mxu0 0.0
        %594 = vmatprep.subr.mxu0 0.0
        %595 = vmatpush1.msra.mxu0 0.0
        %596 = vmatprep.subr.mxu0 %v467
        %597 = vmatpush1.msra.mxu0 %v466
        %598 = vmatprep.subr.mxu0 %v451
        %599 = vmatpush1.msra.mxu0 %v450
        %600 = vmatprep.subr.mxu0 %v435
        %601 = vmatpush1.msra.mxu0 %v434
        %602 = vmatprep.subr.mxu0 %v419
        %603 = vmatpush1.msra.mxu0 %v418
        %604 = vmatprep.subr.mxu0 0.0
        %605 = vmatpush2.msra.mxu0 0.0
        %606 = vmatprep.subr.mxu0 0.0
        %607 = vmatpush2.msra.mxu0 0.0
        %608 = vmatprep.subr.mxu0 0.0
        %609 = vmatpush2.msra.mxu0 0.0
        %610 = vmatprep.subr.mxu0 0.0
        %611 = vmatpush2.msra.mxu0 0.0
        %612 = vmatprep.subr.mxu0 0.0
        %613 = vmatpush2.msra.mxu0 0.0
        %614 = vmatprep.subr.mxu0 0.0
        %615 = vmatpush2.msra.mxu0 0.0
        %616 = vmatprep.subr.mxu0 0.0
        %617 = vmatpush2.msra.mxu0 0.0
        %618 = vmatprep.subr.mxu0 0.0
        %619 = vmatpush2.msra.mxu0 0.0
        %620 = vmatprep.subr.mxu0 0.0
        %621 = vmatpush2.msra.mxu0 0.0
        %622 = vmatprep.subr.mxu0 0.0
        %623 = vmatpush2.msra.mxu0 0.0
        %624 = vmatprep.subr.mxu0 0.0
        %625 = vmatpush2.msra.mxu0 0.0
        %626 = vmatprep.subr.mxu0 0.0
        %627 = vmatpush2.msra.mxu0 0.0
        %628 = vmatprep.subr.mxu0 0.0
        %629 = vmatpush2.msra.mxu0 0.0
        %630 = vmatprep.subr.mxu0 0.0
        %631 = vmatpush2.msra.mxu0 0.0
        %632 = vmatprep.subr.mxu0 0.0
        %633 = vmatpush2.msra.mxu0 0.0
        %634 = vmatprep.subr.mxu0 0.0
        %635 = vmatpush2.msra.mxu0 0.0
        %636 = vmatprep.mubr.f32.mxu0 0.0
        %637 = vmatmul.mubr.f32.gmra.mxu0 %v567
        %v638 = vpop.f32.mrf.mxu0
        %v639 = vadd.f32 %v489, %v638
        %v640 = vpop.f32.mrf.mxu0
        %v641 = vadd.f32 %v493, %v640
        %642 = vmatprep.mubr.f32.mxu0 0.0
        %643 = vmatmul.mubr.f32.gmra.mxu0 %v570
        %v644 = vpop.f32.mrf.mxu0
        %v645 = vadd.f32 %v489, %v644
        %v646 = vpop.f32.mrf.mxu0
        %v647 = vadd.f32 %v493, %v646
        %648 = vdwg.mxu0
        %649 = vmatprep.subr.mxu0 0.0
        %650 = vmatpush1.msra.mxu0 0.0
        %651 = vmatprep.subr.mxu0 0.0
        %652 = vmatpush1.msra.mxu0 0.0
        %653 = vmatprep.subr.mxu0 0.0
        %654 = vmatpush1.msra.mxu0 0.0
        %655 = vmatprep.subr.mxu0 0.0
        %656 = vmatpush1.msra.mxu0 0.0
        %657 = vmatprep.subr.mxu0 0.0
        %658 = vmatpush1.msra.mxu0 0.0
        %659 = vmatprep.subr.mxu0 0.0
        %660 = vmatpush1.msra.mxu0 0.0
        %661 = vmatprep.subr.mxu0 0.0
        %662 = vmatpush1.msra.mxu0 0.0
        %663 = vmatprep.subr.mxu0 0.0
        %664 = vmatpush1.msra.mxu0 0.0
        %665 = vmatprep.subr.mxu0 0.0
        %666 = vmatpush1.msra.mxu0 0.0
        %667 = vmatprep.subr.mxu0 0.0
        %668 = vmatpush1.msra.mxu0 0.0
        %669 = vmatprep.subr.mxu0 0.0
        %670 = vmatpush1.msra.mxu0 0.0
        %671 = vmatprep.subr.mxu0 0.0
        %672 = vmatpush1.msra.mxu0 0.0
        %673 = vmatprep.subr.mxu0 %v469
        %674 = vmatpush1.msra.mxu0 %v468
        %675 = vmatprep.subr.mxu0 %v453
        %676 = vmatpush1.msra.mxu0 %v452
        %677 = vmatprep.subr.mxu0 %v437
        %678 = vmatpush1.msra.mxu0 %v436
        %679 = vmatprep.subr.mxu0 %v421
        %680 = vmatpush1.msra.mxu0 %v420
        %681 = vmatprep.subr.mxu0 0.0
        %682 = vmatpush2.msra.mxu0 0.0
        %683 = vmatprep.subr.mxu0 0.0
        %684 = vmatpush2.msra.mxu0 0.0
        %685 = vmatprep.subr.mxu0 0.0
        %686 = vmatpush2.msra.mxu0 0.0
        %687 = vmatprep.subr.mxu0 0.0
        %688 = vmatpush2.msra.mxu0 0.0
        %689 = vmatprep.subr.mxu0 0.0
        %690 = vmatpush2.msra.mxu0 0.0
        %691 = vmatprep.subr.mxu0 0.0
        %692 = vmatpush2.msra.mxu0 0.0
        %693 = vmatprep.subr.mxu0 0.0
        %694 = vmatpush2.msra.mxu0 0.0
        %695 = vmatprep.subr.mxu0 0.0
        %696 = vmatpush2.msra.mxu0 0.0
        %697 = vmatprep.subr.mxu0 0.0
        %698 = vmatpush2.msra.mxu0 0.0
        %699 = vmatprep.subr.mxu0 0.0
        %700 = vmatpush2.msra.mxu0 0.0
        %701 = vmatprep.subr.mxu0 0.0
        %702 = vmatpush2.msra.mxu0 0.0
        %703 = vmatprep.subr.mxu0 0.0
        %704 = vmatpush2.msra.mxu0 0.0
        %705 = vmatprep.subr.mxu0 0.0
        %706 = vmatpush2.msra.mxu0 0.0
        %707 = vmatprep.subr.mxu0 0.0
        %708 = vmatpush2.msra.mxu0 0.0
        %709 = vmatprep.subr.mxu0 0.0
        %710 = vmatpush2.msra.mxu0 0.0
        %711 = vmatprep.subr.mxu0 0.0
        %712 = vmatpush2.msra.mxu0 0.0
        %713 = vmatprep.mubr.f32.mxu0 0.0
        %714 = vmatmul.mubr.f32.gmra.mxu0 %v567
        %v715 = vpop.f32.mrf.mxu0
        %v716 = vadd.f32 %v497, %v715
        %v717 = vpop.f32.mrf.mxu0
        %v718 = vadd.f32 %v501, %v717
        %719 = vmatprep.mubr.f32.mxu0 0.0
        %720 = vmatmul.mubr.f32.gmra.mxu0 %v570
        %v721 = vpop.f32.mrf.mxu0
        %v722 = vadd.f32 %v497, %v721
        %v723 = vpop.f32.mrf.mxu0
        %v724 = vadd.f32 %v501, %v723
        %725 = vdwg.mxu0
        %726 = vmatprep.subr.mxu0 0.0
        %727 = vmatpush1.msra.mxu0 0.0
        %728 = vmatprep.subr.mxu0 0.0
        %729 = vmatpush1.msra.mxu0 0.0
        %730 = vmatprep.subr.mxu0 0.0
        %731 = vmatpush1.msra.mxu0 0.0
        %732 = vmatprep.subr.mxu0 0.0
        %733 = vmatpush1.msra.mxu0 0.0
        %734 = vmatprep.subr.mxu0 0.0
        %735 = vmatpush1.msra.mxu0 0.0
        %736 = vmatprep.subr.mxu0 0.0
        %737 = vmatpush1.msra.mxu0 0.0
        %738 = vmatprep.subr.mxu0 0.0
        %739 = vmatpush1.msra.mxu0 0.0
        %740 = vmatprep.subr.mxu0 0.0
        %741 = vmatpush1.msra.mxu0 0.0
        %742 = vmatprep.subr.mxu0 0.0
        %743 = vmatpush1.msra.mxu0 0.0
        %744 = vmatprep.subr.mxu0 0.0
        %745 = vmatpush1.msra.mxu0 0.0
        %746 = vmatprep.subr.mxu0 0.0
        %747 = vmatpush1.msra.mxu0 0.0
        %748 = vmatprep.subr.mxu0 0.0
        %749 = vmatpush1.msra.mxu0 0.0
        %750 = vmatprep.subr.mxu0 %v471
        %751 = vmatpush1.msra.mxu0 %v470
        %752 = vmatprep.subr.mxu0 %v455
        %753 = vmatpush1.msra.mxu0 %v454
        %754 = vmatprep.subr.mxu0 %v439
        %755 = vmatpush1.msra.mxu0 %v438
        %756 = vmatprep.subr.mxu0 %v423
        %757 = vmatpush1.msra.mxu0 %v422
        %758 = vmatprep.subr.mxu0 0.0
        %759 = vmatpush2.msra.mxu0 0.0
        %760 = vmatprep.subr.mxu0 0.0
        %761 = vmatpush2.msra.mxu0 0.0
        %762 = vmatprep.subr.mxu0 0.0
        %763 = vmatpush2.msra.mxu0 0.0
        %764 = vmatprep.subr.mxu0 0.0
        %765 = vmatpush2.msra.mxu0 0.0
        %766 = vmatprep.subr.mxu0 0.0
        %767 = vmatpush2.msra.mxu0 0.0
        %768 = vmatprep.subr.mxu0 0.0
        %769 = vmatpush2.msra.mxu0 0.0
        %770 = vmatprep.subr.mxu0 0.0
        %771 = vmatpush2.msra.mxu0 0.0
        %772 = vmatprep.subr.mxu0 0.0
        %773 = vmatpush2.msra.mxu0 0.0
        %774 = vmatprep.subr.mxu0 0.0
        %775 = vmatpush2.msra.mxu0 0.0
        %776 = vmatprep.subr.mxu0 0.0
        %777 = vmatpush2.msra.mxu0 0.0
        %778 = vmatprep.subr.mxu0 0.0
        %779 = vmatpush2.msra.mxu0 0.0
        %780 = vmatprep.subr.mxu0 0.0
        %781 = vmatpush2.msra.mxu0 0.0
        %782 = vmatprep.subr.mxu0 0.0
        %783 = vmatpush2.msra.mxu0 0.0
        %784 = vmatprep.subr.mxu0 0.0
        %785 = vmatpush2.msra.mxu0 0.0
        %786 = vmatprep.subr.mxu0 0.0
        %787 = vmatpush2.msra.mxu0 0.0
        %788 = vmatprep.subr.mxu0 0.0
        %789 = vmatpush2.msra.mxu0 0.0
        %790 = vmatprep.mubr.f32.mxu0 0.0
        %791 = vmatmul.mubr.f32.gmra.mxu0 %v567
        %v792 = vpop.f32.mrf.mxu0
        %v793 = vadd.f32 %v505, %v792
        %v794 = vpop.f32.mrf.mxu0
        %v795 = vadd.f32 %v509, %v794
        %796 = vmatprep.mubr.f32.mxu0 0.0
        %797 = vmatmul.mubr.f32.gmra.mxu0 %v570
        %v798 = vpop.f32.mrf.mxu0
        %v799 = vadd.f32 %v505, %v798
        %v800 = vpop.f32.mrf.mxu0
        %v801 = vadd.f32 %v509, %v800
        %802 = vdwg.mxu0
        %803 = vmatprep.subr.mxu0 0.0
        %804 = vmatpush1.msra.mxu0 0.0
        %805 = vmatprep.subr.mxu0 0.0
        %806 = vmatpush1.msra.mxu0 0.0
        %807 = vmatprep.subr.mxu0 0.0
        %808 = vmatpush1.msra.mxu0 0.0
        %809 = vmatprep.subr.mxu0 0.0
        %810 = vmatpush1.msra.mxu0 0.0
        %811 = vmatprep.subr.mxu0 0.0
        %812 = vmatpush1.msra.mxu0 0.0
        %813 = vmatprep.subr.mxu0 0.0
        %814 = vmatpush1.msra.mxu0 0.0
        %815 = vmatprep.subr.mxu0 0.0
        %816 = vmatpush1.msra.mxu0 0.0
        %817 = vmatprep.subr.mxu0 0.0
        %818 = vmatpush1.msra.mxu0 0.0
        %819 = vmatprep.subr.mxu0 0.0
        %820 = vmatpush1.msra.mxu0 0.0
        %821 = vmatprep.subr.mxu0 0.0
        %822 = vmatpush1.msra.mxu0 0.0
        %823 = vmatprep.subr.mxu0 0.0
        %824 = vmatpush1.msra.mxu0 0.0
        %825 = vmatprep.subr.mxu0 0.0
        %826 = vmatpush1.msra.mxu0 0.0
        %827 = vmatprep.subr.mxu0 %v473
        %828 = vmatpush1.msra.mxu0 %v472
        %829 = vmatprep.subr.mxu0 %v457
        %830 = vmatpush1.msra.mxu0 %v456
        %831 = vmatprep.subr.mxu0 %v441
        %832 = vmatpush1.msra.mxu0 %v440
        %833 = vmatprep.subr.mxu0 %v425
        %834 = vmatpush1.msra.mxu0 %v424
        %835 = vmatprep.subr.mxu0 0.0
        %836 = vmatpush2.msra.mxu0 0.0
        %837 = vmatprep.subr.mxu0 0.0
        %838 = vmatpush2.msra.mxu0 0.0
        %839 = vmatprep.subr.mxu0 0.0
        %840 = vmatpush2.msra.mxu0 0.0
        %841 = vmatprep.subr.mxu0 0.0
        %842 = vmatpush2.msra.mxu0 0.0
        %843 = vmatprep.subr.mxu0 0.0
        %844 = vmatpush2.msra.mxu0 0.0
        %845 = vmatprep.subr.mxu0 0.0
        %846 = vmatpush2.msra.mxu0 0.0
        %847 = vmatprep.subr.mxu0 0.0
        %848 = vmatpush2.msra.mxu0 0.0
        %849 = vmatprep.subr.mxu0 0.0
        %850 = vmatpush2.msra.mxu0 0.0
        %851 = vmatprep.subr.mxu0 0.0
        %852 = vmatpush2.msra.mxu0 0.0
        %853 = vmatprep.subr.mxu0 0.0
        %854 = vmatpush2.msra.mxu0 0.0
        %855 = vmatprep.subr.mxu0 0.0
        %856 = vmatpush2.msra.mxu0 0.0
        %857 = vmatprep.subr.mxu0 0.0
        %858 = vmatpush2.msra.mxu0 0.0
        %859 = vmatprep.subr.mxu0 0.0
        %860 = vmatpush2.msra.mxu0 0.0
        %861 = vmatprep.subr.mxu0 0.0
        %862 = vmatpush2.msra.mxu0 0.0
        %863 = vmatprep.subr.mxu0 0.0
        %864 = vmatpush2.msra.mxu0 0.0
        %865 = vmatprep.subr.mxu0 0.0
        %866 = vmatpush2.msra.mxu0 0.0
        %867 = vmatprep.mubr.f32.mxu0 0.0
        %868 = vmatmul.mubr.f32.gmra.mxu0 %v567
        %v869 = vpop.f32.mrf.mxu0
        %v870 = vadd.f32 %v513, %v869
        %v871 = vpop.f32.mrf.mxu0
        %v872 = vadd.f32 %v517, %v871
        %873 = vmatprep.mubr.f32.mxu0 0.0
        %874 = vmatmul.mubr.f32.gmra.mxu0 %v570
        %v875 = vpop.f32.mrf.mxu0
        %v876 = vadd.f32 %v513, %v875
        %v877 = vpop.f32.mrf.mxu0
        %v878 = vadd.f32 %v517, %v877
        %879 = vdwg.mxu0
        %880 = vmatprep.subr.mxu0 0.0
        %881 = vmatpush1.msra.mxu0 0.0
        %882 = vmatprep.subr.mxu0 0.0
        %883 = vmatpush1.msra.mxu0 0.0
        %884 = vmatprep.subr.mxu0 0.0
        %885 = vmatpush1.msra.mxu0 0.0
        %886 = vmatprep.subr.mxu0 0.0
        %887 = vmatpush1.msra.mxu0 0.0
        %888 = vmatprep.subr.mxu0 0.0
        %889 = vmatpush1.msra.mxu0 0.0
        %890 = vmatprep.subr.mxu0 0.0
        %891 = vmatpush1.msra.mxu0 0.0
        %892 = vmatprep.subr.mxu0 0.0
        %893 = vmatpush1.msra.mxu0 0.0
        %894 = vmatprep.subr.mxu0 0.0
        %895 = vmatpush1.msra.mxu0 0.0
        %896 = vmatprep.subr.mxu0 0.0
        %897 = vmatpush1.msra.mxu0 0.0
        %898 = vmatprep.subr.mxu0 0.0
        %899 = vmatpush1.msra.mxu0 0.0
        %900 = vmatprep.subr.mxu0 0.0
        %901 = vmatpush1.msra.mxu0 0.0
        %902 = vmatprep.subr.mxu0 0.0
        %903 = vmatpush1.msra.mxu0 0.0
        %904 = vmatprep.subr.mxu0 %v475
        %905 = vmatpush1.msra.mxu0 %v474
        %906 = vmatprep.subr.mxu0 %v459
        %907 = vmatpush1.msra.mxu0 %v458
        %908 = vmatprep.subr.mxu0 %v443
        %909 = vmatpush1.msra.mxu0 %v442
        %910 = vmatprep.subr.mxu0 %v427
        %911 = vmatpush1.msra.mxu0 %v426
        %912 = vmatprep.subr.mxu0 0.0
        %913 = vmatpush2.msra.mxu0 0.0
        %914 = vmatprep.subr.mxu0 0.0
        %915 = vmatpush2.msra.mxu0 0.0
        %916 = vmatprep.subr.mxu0 0.0
        %917 = vmatpush2.msra.mxu0 0.0
        %918 = vmatprep.subr.mxu0 0.0
        %919 = vmatpush2.msra.mxu0 0.0
        %920 = vmatprep.subr.mxu0 0.0
        %921 = vmatpush2.msra.mxu0 0.0
        %922 = vmatprep.subr.mxu0 0.0
        %923 = vmatpush2.msra.mxu0 0.0
        %924 = vmatprep.subr.mxu0 0.0
        %925 = vmatpush2.msra.mxu0 0.0
        %926 = vmatprep.subr.mxu0 0.0
        %927 = vmatpush2.msra.mxu0 0.0
        %928 = vmatprep.subr.mxu0 0.0
        %929 = vmatpush2.msra.mxu0 0.0
        %930 = vmatprep.subr.mxu0 0.0
        %931 = vmatpush2.msra.mxu0 0.0
        %932 = vmatprep.subr.mxu0 0.0
        %933 = vmatpush2.msra.mxu0 0.0
        %934 = vmatprep.subr.mxu0 0.0
        %935 = vmatpush2.msra.mxu0 0.0
        %936 = vmatprep.subr.mxu0 0.0
        %937 = vmatpush2.msra.mxu0 0.0
        %938 = vmatprep.subr.mxu0 0.0
        %939 = vmatpush2.msra.mxu0 0.0
        %940 = vmatprep.subr.mxu0 0.0
        %941 = vmatpush2.msra.mxu0 0.0
        %942 = vmatprep.subr.mxu0 0.0
        %943 = vmatpush2.msra.mxu0 0.0
        %944 = vmatprep.mubr.f32.mxu0 0.0
        %945 = vmatmul.mubr.f32.gmra.mxu0 %v567
        %v946 = vpop.f32.mrf.mxu0
        %v947 = vadd.f32 %v521, %v946
        %v948 = vpop.f32.mrf.mxu0
        %v949 = vadd.f32 %v525, %v948
        %950 = vmatprep.mubr.f32.mxu0 0.0
        %951 = vmatmul.mubr.f32.gmra.mxu0 %v570
        %v952 = vpop.f32.mrf.mxu0
        %v953 = vadd.f32 %v521, %v952
        %v954 = vpop.f32.mrf.mxu0
        %v955 = vadd.f32 %v525, %v954
        %956 = vdwg.mxu0
        %957 = vmatprep.subr.mxu0 0.0
        %958 = vmatpush1.msra.mxu0 0.0
        %959 = vmatprep.subr.mxu0 0.0
        %960 = vmatpush1.msra.mxu0 0.0
        %961 = vmatprep.subr.mxu0 0.0
        %962 = vmatpush1.msra.mxu0 0.0
        %963 = vmatprep.subr.mxu0 0.0
        %964 = vmatpush1.msra.mxu0 0.0
        %965 = vmatprep.subr.mxu0 0.0
        %966 = vmatpush1.msra.mxu0 0.0
        %967 = vmatprep.subr.mxu0 0.0
        %968 = vmatpush1.msra.mxu0 0.0
        %969 = vmatprep.subr.mxu0 0.0
        %970 = vmatpush1.msra.mxu0 0.0
        %971 = vmatprep.subr.mxu0 0.0
        %972 = vmatpush1.msra.mxu0 0.0
        %973 = vmatprep.subr.mxu0 0.0
        %974 = vmatpush1.msra.mxu0 0.0
        %975 = vmatprep.subr.mxu0 0.0
        %976 = vmatpush1.msra.mxu0 0.0
        %977 = vmatprep.subr.mxu0 0.0
        %978 = vmatpush1.msra.mxu0 0.0
        %979 = vmatprep.subr.mxu0 0.0
        %980 = vmatpush1.msra.mxu0 0.0
        %981 = vmatprep.subr.mxu0 %v477
        %982 = vmatpush1.msra.mxu0 %v476
        %983 = vmatprep.subr.mxu0 %v461
        %984 = vmatpush1.msra.mxu0 %v460
        %985 = vmatprep.subr.mxu0 %v445
        %986 = vmatpush1.msra.mxu0 %v444
        %987 = vmatprep.subr.mxu0 %v429
        %988 = vmatpush1.msra.mxu0 %v428
        %989 = vmatprep.subr.mxu0 0.0
        %990 = vmatpush2.msra.mxu0 0.0
        %991 = vmatprep.subr.mxu0 0.0
        %992 = vmatpush2.msra.mxu0 0.0
        %993 = vmatprep.subr.mxu0 0.0
        %994 = vmatpush2.msra.mxu0 0.0
        %995 = vmatprep.subr.mxu0 0.0
        %996 = vmatpush2.msra.mxu0 0.0
        %997 = vmatprep.subr.mxu0 0.0
        %998 = vmatpush2.msra.mxu0 0.0
        %999 = vmatprep.subr.mxu0 0.0
        %1000 = vmatpush2.msra.mxu0 0.0
        %1001 = vmatprep.subr.mxu0 0.0
        %1002 = vmatpush2.msra.mxu0 0.0
        %1003 = vmatprep.subr.mxu0 0.0
        %1004 = vmatpush2.msra.mxu0 0.0
        %1005 = vmatprep.subr.mxu0 0.0
        %1006 = vmatpush2.msra.mxu0 0.0
        %1007 = vmatprep.subr.mxu0 0.0
        %1008 = vmatpush2.msra.mxu0 0.0
        %1009 = vmatprep.subr.mxu0 0.0
        %1010 = vmatpush2.msra.mxu0 0.0
        %1011 = vmatprep.subr.mxu0 0.0
        %1012 = vmatpush2.msra.mxu0 0.0
        %1013 = vmatprep.subr.mxu0 0.0
        %1014 = vmatpush2.msra.mxu0 0.0
        %1015 = vmatprep.subr.mxu0 0.0
        %1016 = vmatpush2.msra.mxu0 0.0
        %1017 = vmatprep.subr.mxu0 0.0
        %1018 = vmatpush2.msra.mxu0 0.0
        %1019 = vmatprep.subr.mxu0 0.0
        %1020 = vmatpush2.msra.mxu0 0.0
        %1021 = vmatprep.mubr.f32.mxu0 0.0
        %1022 = vmatmul.mubr.f32.gmra.mxu0 %v567
        %v1023 = vpop.f32.mrf.mxu0
        %v1024 = vadd.f32 %v529, %v1023
        %v1025 = vpop.f32.mrf.mxu0
        %v1026 = vadd.f32 %v533, %v1025
        %1027 = vmatprep.mubr.f32.mxu0 0.0
        %1028 = vmatmul.mubr.f32.gmra.mxu0 %v570
        %v1029 = vpop.f32.mrf.mxu0
        %v1030 = vadd.f32 %v529, %v1029
        %v1031 = vpop.f32.mrf.mxu0
        %v1032 = vadd.f32 %v533, %v1031
        %1033 = vdwg.mxu0
        %1034 = vmatprep.subr.mxu0 0.0
        %1035 = vmatpush1.msra.mxu0 0.0
        %1036 = vmatprep.subr.mxu0 0.0
        %1037 = vmatpush1.msra.mxu0 0.0
        %1038 = vmatprep.subr.mxu0 0.0
        %1039 = vmatpush1.msra.mxu0 0.0
        %1040 = vmatprep.subr.mxu0 0.0
        %1041 = vmatpush1.msra.mxu0 0.0
        %1042 = vmatprep.subr.mxu0 0.0
        %1043 = vmatpush1.msra.mxu0 0.0
        %1044 = vmatprep.subr.mxu0 0.0
        %1045 = vmatpush1.msra.mxu0 0.0
        %1046 = vmatprep.subr.mxu0 0.0
        %1047 = vmatpush1.msra.mxu0 0.0
        %1048 = vmatprep.subr.mxu0 0.0
        %1049 = vmatpush1.msra.mxu0 0.0
        %1050 = vmatprep.subr.mxu0 0.0
        %1051 = vmatpush1.msra.mxu0 0.0
        %1052 = vmatprep.subr.mxu0 0.0
        %1053 = vmatpush1.msra.mxu0 0.0
        %1054 = vmatprep.subr.mxu0 0.0
        %1055 = vmatpush1.msra.mxu0 0.0
        %1056 = vmatprep.subr.mxu0 0.0
        %1057 = vmatpush1.msra.mxu0 0.0
        %1058 = vmatprep.subr.mxu0 %v479
        %1059 = vmatpush1.msra.mxu0 %v478
        %1060 = vmatprep.subr.mxu0 %v463
        %1061 = vmatpush1.msra.mxu0 %v462
        %1062 = vmatprep.subr.mxu0 %v447
        %1063 = vmatpush1.msra.mxu0 %v446
        %1064 = vmatprep.subr.mxu0 %v431
        %1065 = vmatpush1.msra.mxu0 %v430
        %1066 = vmatprep.subr.mxu0 0.0
        %1067 = vmatpush2.msra.mxu0 0.0
        %1068 = vmatprep.subr.mxu0 0.0
        %1069 = vmatpush2.msra.mxu0 0.0
        %1070 = vmatprep.subr.mxu0 0.0
        %1071 = vmatpush2.msra.mxu0 0.0
        %1072 = vmatprep.subr.mxu0 0.0
        %1073 = vmatpush2.msra.mxu0 0.0
        %1074 = vmatprep.subr.mxu0 0.0
        %1075 = vmatpush2.msra.mxu0 0.0
        %1076 = vmatprep.subr.mxu0 0.0
        %1077 = vmatpush2.msra.mxu0 0.0
        %1078 = vmatprep.subr.mxu0 0.0
        %1079 = vmatpush2.msra.mxu0 0.0
        %1080 = vmatprep.subr.mxu0 0.0
        %1081 = vmatpush2.msra.mxu0 0.0
        %1082 = vmatprep.subr.mxu0 0.0
        %1083 = vmatpush2.msra.mxu0 0.0
        %1084 = vmatprep.subr.mxu0 0.0
        %1085 = vmatpush2.msra.mxu0 0.0
        %1086 = vmatprep.subr.mxu0 0.0
        %1087 = vmatpush2.msra.mxu0 0.0
        %1088 = vmatprep.subr.mxu0 0.0
        %1089 = vmatpush2.msra.mxu0 0.0
        %1090 = vmatprep.subr.mxu0 0.0
        %1091 = vmatpush2.msra.mxu0 0.0
        %1092 = vmatprep.subr.mxu0 0.0
        %1093 = vmatpush2.msra.mxu0 0.0
        %1094 = vmatprep.subr.mxu0 0.0
        %1095 = vmatpush2.msra.mxu0 0.0
        %1096 = vmatprep.subr.mxu0 0.0
        %1097 = vmatpush2.msra.mxu0 0.0
        %1098 = vmatprep.mubr.f32.mxu0 0.0
        %1099 = vmatmul.mubr.f32.gmra.mxu0 %v567
        %v1100 = vpop.f32.mrf.mxu0
        %v1101 = vadd.f32 %v537, %v1100
        %v1102 = vpop.f32.mrf.mxu0
        %v1103 = vadd.f32 %v541, %v1102
        %1104 = vmatprep.mubr.f32.mxu0 0.0
        %1105 = vmatmul.mubr.f32.gmra.mxu0 %v570
        %v1106 = vpop.f32.mrf.mxu0
        %v1107 = vadd.f32 %v537, %v1106
        %v1108 = vpop.f32.mrf.mxu0
        %v1109 = vadd.f32 %v541, %v1108
        %1110 = vdwg.mxu0
        %1111 = vmatprep.subr.mxu0 0.0
        %1112 = vmatpush1.msra.mxu0 0.0
        %1113 = vmatprep.subr.mxu0 0.0
        %1114 = vmatpush1.msra.mxu0 0.0
        %1115 = vmatprep.subr.mxu0 0.0
        %1116 = vmatpush1.msra.mxu0 0.0
        %1117 = vmatprep.subr.mxu0 0.0
        %1118 = vmatpush1.msra.mxu0 0.0
        %1119 = vmatprep.subr.mxu0 0.0
        %1120 = vmatpush1.msra.mxu0 0.0
        %1121 = vmatprep.subr.mxu0 0.0
        %1122 = vmatpush1.msra.mxu0 0.0
        %1123 = vmatprep.subr.mxu0 0.0
        %1124 = vmatpush1.msra.mxu0 0.0
        %1125 = vmatprep.subr.mxu0 0.0
        %1126 = vmatpush1.msra.mxu0 0.0
        %1127 = vmatprep.subr.mxu0 0.0
        %1128 = vmatpush1.msra.mxu0 0.0
        %1129 = vmatprep.subr.mxu0 0.0
        %1130 = vmatpush1.msra.mxu0 0.0
        %1131 = vmatprep.subr.mxu0 0.0
        %1132 = vmatpush1.msra.mxu0 0.0
        %1133 = vmatprep.subr.mxu0 0.0
        %1134 = vmatpush1.msra.mxu0 0.0
        %1135 = vmatprep.subr.mxu0 %v481
        %1136 = vmatpush1.msra.mxu0 %v480
        %1137 = vmatprep.subr.mxu0 %v465
        %1138 = vmatpush1.msra.mxu0 %v464
        %1139 = vmatprep.subr.mxu0 %v449
        %1140 = vmatpush1.msra.mxu0 %v448
        %1141 = vmatprep.subr.mxu0 %v433
        %1142 = vmatpush1.msra.mxu0 %v432
        %1143 = vmatprep.subr.mxu0 0.0
        %1144 = vmatpush2.msra.mxu0 0.0
        %1145 = vmatprep.subr.mxu0 0.0
        %1146 = vmatpush2.msra.mxu0 0.0
        %1147 = vmatprep.subr.mxu0 0.0
        %1148 = vmatpush2.msra.mxu0 0.0
        %1149 = vmatprep.subr.mxu0 0.0
        %1150 = vmatpush2.msra.mxu0 0.0
        %1151 = vmatprep.subr.mxu0 0.0
        %1152 = vmatpush2.msra.mxu0 0.0
        %1153 = vmatprep.subr.mxu0 0.0
        %1154 = vmatpush2.msra.mxu0 0.0
        %1155 = vmatprep.subr.mxu0 0.0
        %1156 = vmatpush2.msra.mxu0 0.0
        %1157 = vmatprep.subr.mxu0 0.0
        %1158 = vmatpush2.msra.mxu0 0.0
        %1159 = vmatprep.subr.mxu0 0.0
        %1160 = vmatpush2.msra.mxu0 0.0
        %1161 = vmatprep.subr.mxu0 0.0
        %1162 = vmatpush2.msra.mxu0 0.0
        %1163 = vmatprep.subr.mxu0 0.0
        %1164 = vmatpush2.msra.mxu0 0.0
        %1165 = vmatprep.subr.mxu0 0.0
        %1166 = vmatpush2.msra.mxu0 0.0
        %1167 = vmatprep.subr.mxu0 0.0
        %1168 = vmatpush2.msra.mxu0 0.0
        %1169 = vmatprep.subr.mxu0 0.0
        %1170 = vmatpush2.msra.mxu0 0.0
        %1171 = vmatprep.subr.mxu0 0.0
        %1172 = vmatpush2.msra.mxu0 0.0
        %1173 = vmatprep.subr.mxu0 0.0
        %1174 = vmatpush2.msra.mxu0 0.0
        %1175 = vmatprep.mubr.f32.mxu0 0.0
        %1176 = vmatmul.mubr.f32.gmra.mxu0 %v567
        %v1177 = vpop.f32.mrf.mxu0
        %v1178 = vadd.f32 %v545, %v1177
        %v1179 = vpop.f32.mrf.mxu0
        %v1180 = vadd.f32 %v549, %v1179
        %1181 = vmatprep.mubr.f32.mxu0 0.0
        %1182 = vmatmul.mubr.f32.gmra.mxu0 %v570
        %v1183 = vpop.f32.mrf.mxu0
        %v1184 = vadd.f32 %v545, %v1183
        %v1185 = vpop.f32.mrf.mxu0
        %v1186 = vadd.f32 %v549, %v1185
        %1187 = vdwg.mxu0
        %1188 = vst [vmem:[%s319] sm:$0xff] %v639
        %1189 = vst [vmem:[%s319 + $0x8] sm:$0xff] %v641
        %1190 = vst [vmem:[%s319 + $0x10] sm:$0xff] %v716
        %1191 = vst [vmem:[%s319 + $0x18] sm:$0xff] %v718
        %1192 = vst [vmem:[%s319 + $0x20] sm:$0xff] %v793
        %1193 = vst [vmem:[%s319 + $0x28] sm:$0xff] %v795
        %1194 = vst [vmem:[%s319 + $0x30] sm:$0xff] %v870
        %1195 = vst [vmem:[%s319 + $0x38] sm:$0xff] %v872
        %1196 = vst [vmem:[%s319 + $0x40] sm:$0xff] %v947
        %1197 = vst [vmem:[%s319 + $0x48] sm:$0xff] %v949
        %1198 = vst [vmem:[%s319 + $0x50] sm:$0xff] %v1024
        %1199 = vst [vmem:[%s319 + $0x58] sm:$0xff] %v1026
        %1200 = vst [vmem:[%s319 + $0x60] sm:$0xff] %v1101
        %1201 = vst [vmem:[%s319 + $0x68] sm:$0xff] %v1103
        %1202 = vst [vmem:[%s319 + $0x70] sm:$0xff] %v1178
        %1203 = vst [vmem:[%s319 + $0x78] sm:$0xff] %v1180
        %1204 = vst [vmem:[%s319 + $0x80] sm:$0xff] %v645
        %1205 = vst [vmem:[%s319 + $0x88] sm:$0xff] %v647
        %1206 = vst [vmem:[%s319 + $0x90] sm:$0xff] %v722
        %1207 = vst [vmem:[%s319 + $0x98] sm:$0xff] %v724
        %1208 = vst [vmem:[%s319 + $0xa0] sm:$0xff] %v799
        %1209 = vst [vmem:[%s319 + $0xa8] sm:$0xff] %v801
        %1210 = vst [vmem:[%s319 + $0xb0] sm:$0xff] %v876
        %1211 = vst [vmem:[%s319 + $0xb8] sm:$0xff] %v878
        %1212 = vst [vmem:[%s319 + $0xc0] sm:$0xff] %v953
        %1213 = vst [vmem:[%s319 + $0xc8] sm:$0xff] %v955
        %1214 = vst [vmem:[%s319 + $0xd0] sm:$0xff] %v1030
        %1215 = vst [vmem:[%s319 + $0xd8] sm:$0xff] %v1032
        %1216 = vst [vmem:[%s319 + $0xe0] sm:$0xff] %v1107
        %1217 = vst [vmem:[%s319 + $0xe8] sm:$0xff] %v1109
        %1218 = vst [vmem:[%s319 + $0xf0] sm:$0xff] %v1184
        %1219 = vst [vmem:[%s319 + $0xf8] sm:$0xff] %v1186
        %s1220 = sand.u32 %s147, 1
        %s1221 = scalar_lea.sflag [#allocation4], %s1220
        %s1222 = sand.u32 %s147, 1
        %s1223 = smul.addr %s1222, 256
        %s1224 = scalar_lea.vmem [#allocation11], %s1223
        // Predicated region
        $region61: #{tpu_custom_call.1} parent=39 // pred_check
          %p1225 = pneg %p157
        $region62: #{tpu_custom_call.1} parent=39 // pred_check_branch
          %1227 = sbr.rel (%p1225) target = $region64
        $region63: #{tpu_custom_call.1} parent=39 // pred_region
          %s1228 = smul.u32 16, %s24
          %s1230 = ssub.s32 4096, 4096
          %1231 = vsyncadd %s1221, %s1230
          %s1232 = smul.addr %s1228, 128
          %s1233 = scalar_lea.hbm %s5, %s1232
          %s1234 = sshll.u32 %s1224, 4
          %s1235 = int_to_ptr.vmem [resolvable:$true] %s1234
          %1240 = dma.vmem_to_hbm [thread:$0]  %s1235, 4096, %s1233, %s1221, 2048, 30720, 128
        $region64: #{tpu_custom_call.1} parent=39 // pred_fallthru
          _
      $region40: #{tpu_custom_call.1} parent=5 // pred_fallthru
        _
      %p1241 = scmp.le.s32.totalorder 2, %s19
      // Predicated region
      $region65: #{tpu_custom_call.1} parent=5 // pred_check
        %p1242 = pneg %p1241
      $region66: #{tpu_custom_call.1} parent=5 // pred_check_branch
        %1244 = sbr.rel (%p1242) target = $region68
      $region67: #{tpu_custom_call.1} parent=5 // pred_region
        %s1245 = ssub.s32 %s19, 2
        // Predicated region
        $region69: #{tpu_custom_call.1} parent=67 // pred_check
          %p1246 = pneg %p163
        $region70: #{tpu_custom_call.1} parent=67 // pred_check_branch
          %1248 = sbr.rel (%p1246) target = $region72
        $region71: #{tpu_custom_call.1} parent=67 // pred_region
          %s1249 = sand.u32 %s148, 1
          %s1250 = scalar_lea.sflag [#allocation4], %s1249
          %s1251 = sand.u32 %s148, 1
          %s1252 = smul.addr %s1251, 256
          %s1253 = scalar_lea.vmem [#allocation11], %s1252
          %1254 = dma.done %s1250, 4096
        $region72: #{tpu_custom_call.1} parent=67 // pred_fallthru
          _
      $region68: #{tpu_custom_call.1} parent=5 // pred_fallthru
        _
    $region6: #{tpu_custom_call.1} parent=1 // loop_footer
      %s23 = sadd.s32 1, %s19
    $region7: #{tpu_custom_call.1} parent=1 // loop_footer_branch
      %18 = sbr.rel target = $region3
    $region8: #{tpu_custom_call.1} parent=1 // loop_exit
      _
    %1255 = vsyncpa [#allocation3], 1
    %s1256 = scalar_lea.sflag [#allocation3], 1
    %1257 = vsyncpa %s1256, 1
    %1258 = vsyncpa [#allocation6], 1
    %1259 = vsyncpa [#allocation9], 1
    %s1260 = scalar_lea.sflag [#allocation9], 1
    %1261 = vsyncpa %s1260, 1
    %1262 = vsyncpa [#allocation4], 1
    %s1263 = scalar_lea.sflag [#allocation4], 1
    %1264 = vsyncpa %s1263, 1

</llo_original>
